<compile_context>
chip_gen: v7x
topology: tpu7x:2x2x1
jax: 0.10.0
libtpu: 0.0.40
codegen_flags: <defaults>
</compile_context>

<pallas_src>
import functools

import jax
import jax.numpy as jnp
from jax import lax
from jax.experimental import pallas as pl
from jax.experimental.pallas import tpu as pltpu


def _round_up(x, m):
    return ((x + m - 1) // m) * m


def _vmem_limit(nbytes):
    # Explicit scoped-VMEM budget sized to the footprint (+ headroom), clamped
    # so it stays safely inside v7x's 64 MiB physical VMEM.
    return int(min(max(2 * nbytes + (2 << 20), 16 << 20), 48 << 20))


# --------------------------- kernels ----------------------------------------

def _lin1_relu_kernel(x_ref, w1_ref, b1_ref, z_ref, ah_ref, *, alpha):
    h = jnp.dot(x_ref[...], w1_ref[...],
                preferred_element_type=jnp.float32) + b1_ref[...]
    h = jnp.maximum(h, 0.0)
    z_ref[...] = h
    ah_ref[...] = alpha * h        # teleport term hoisted out of the K loop


def _propagate_kernel(a_ref, z_ref, ah_ref, o_ref, acc_ref):
    # One APPNP power-iteration step, tiled:
    #   z_new[i] = sum_j A_scaled[i, j] @ z[j] + alpha*h[i]
    # A_scaled already carries the (1 - alpha) factor (folded once, outside).
    j = pl.program_id(1)

    @pl.when(j == 0)
    def _():
        acc_ref[...] = ah_ref[...]

    acc_ref[...] += jnp.dot(a_ref[...], z_ref[...].astype(jnp.bfloat16),
                            preferred_element_type=jnp.float32)

    @pl.when(j == pl.num_programs(1) - 1)
    def _():
        o_ref[...] = acc_ref[...]


def _epilogue_kernel(pool_ref, z_ref, w2_ref, b2_ref, out_ref):
    # global_mean_pool as a (G, N) @ (N, H) matmul
    pooled = jnp.dot(pool_ref[...], z_ref[...],
                     preferred_element_type=jnp.float32)
    # dropout(p=0.5) is identity in eval mode (training=False)
    # TODO(synk): training-mode dropout via pltpu.prng_random_bits not implemented.
    logits = jnp.dot(pooled, w2_ref[...],
                     preferred_element_type=jnp.float32) + b2_ref[...]
    m = jnp.max(logits, axis=1, keepdims=True)
    shifted = logits - m
    lse = jnp.log(jnp.sum(jnp.exp(shifted), axis=1, keepdims=True))
    out_ref[...] = shifted - lse


# --------------------------- pallas_call wrappers ----------------------------

def _lin1_relu(x_p, w1_p, b1_p, *, alpha, tile):
    n_pad, f = x_p.shape
    h_pad = w1_p.shape[1]
    out_sds = jax.ShapeDtypeStruct((n_pad, h_pad), jnp.float32)
    nbytes = 2 * (tile * f * 4 + f * h_pad * 4 + h_pad * 4
                  + 2 * tile * h_pad * 4)
    return pl.pallas_call(
        functools.partial(_lin1_relu_kernel, alpha=alpha),
        out_shape=(out_sds, out_sds),
        grid=(n_pad // tile,),
        in_specs=[pl.BlockSpec((tile, f), lambda i: (i, 0)),
                  pl.BlockSpec((f, h_pad), lambda i: (0, 0)),
                  pl.BlockSpec((1, h_pad), lambda i: (0, 0))],
        out_specs=(pl.BlockSpec((tile, h_pad), lambda i: (i, 0)),
                   pl.BlockSpec((tile, h_pad), lambda i: (i, 0))),
        compiler_params=pltpu.CompilerParams(
            dimension_semantics=("parallel",),
            vmem_limit_bytes=_vmem_limit(nbytes)),
    )(x_p, w1_p, b1_p)


def _propagate_step(a_p, z, ah, *, tile):
    n_pad = a_p.shape[0]
    h_pad = z.shape[1]
    grid = (n_pad // tile, n_pad // tile)
    nbytes = 2 * (tile * tile * 2 + 3 * tile * h_pad * 4) + tile * h_pad * 4
    cost = pl.CostEstimate(
        flops=2 * n_pad * n_pad * h_pad,
        transcendentals=0,
        bytes_accessed=n_pad * n_pad * 2 + 3 * n_pad * h_pad * 4)
    return pl.pallas_call(
        _propagate_kernel,
        out_shape=jax.ShapeDtypeStruct((n_pad, h_pad), jnp.float32),
        grid=grid,
        in_specs=[pl.BlockSpec((tile, tile), lambda i, j: (i, j)),
                  pl.BlockSpec((tile, h_pad), lambda i, j: (j, 0)),
                  pl.BlockSpec((tile, h_pad), lambda i, j: (i, 0))],
        out_specs=pl.BlockSpec((tile, h_pad), lambda i, j: (i, 0)),
        scratch_shapes=[pltpu.VMEM((tile, h_pad), jnp.float32)],
        compiler_params=pltpu.CompilerParams(
            dimension_semantics=("parallel", "arbitrary"),
            vmem_limit_bytes=_vmem_limit(nbytes)),
        cost_estimate=cost,
    )(a_p, z, ah)


def _epilogue(pool_p, z, w2_p, b2):
    g = pool_p.shape[0]
    c = w2_p.shape[1]
    vspec = pl.BlockSpec(memory_space=pltpu.MemorySpace.VMEM)
    nbytes = sum(int(a.size) * a.dtype.itemsize for a in (pool_p, z, w2_p, b2))
    return pl.pallas_call(
        _epilogue_kernel,
        out_shape=jax.ShapeDtypeStruct((g, c), jnp.float32),
        in_specs=[vspec] * 4,
        out_specs=vspec,
        compiler_params=pltpu.CompilerParams(
            vmem_limit_bytes=_vmem_limit(nbytes)),
    )(pool_p, z, w2_p, b2)


@functools.partial(jax.jit, static_argnames=("alpha", "K", "num_layers"))
def appnp_net_forward(x, a_hat, pool, w1, b1, w2, b2, *,
                      alpha=0.2, K=5, num_layers=1):
    n, _ = x.shape
    h = w1.shape[1]

    # Pad the hidden dim to a full 128-lane vreg width and nodes to a tile
    # multiple.  Zero padding is exact: padded hidden columns stay zero through
    # ReLU / propagation, and padded node rows/cols of A and pool are zero so
    # they never leak into real outputs.
    h_pad = _round_up(h, 128)
    n_pad = _round_up(n, 128)
    tile = 128
    for t in (512, 256):
        if n_pad % t == 0:
            tile = t
            break

    x_p = jnp.pad(x, ((0, n_pad - n), (0, 0)))
    w1_p = jnp.pad(w1, ((0, 0), (0, h_pad - h)))
    b1_p = jnp.pad(b1, ((0, 0), (0, h_pad - h)))
    w2_p = jnp.pad(w2, ((0, h_pad - h), (0, 0)))
    pool_p = jnp.pad(pool, ((0, 0), (0, n_pad - n)))
    # Fold (1 - alpha) into A once (it is reused K * num_layers times) and
    # store it in bf16 to halve HBM traffic / VMEM footprint of the streaming.
    a_p = jnp.pad(((1.0 - alpha) * a_hat).astype(jnp.bfloat16),
                  ((0, n_pad - n), (0, n_pad - n)))

    # lin1 + ReLU + hoisted teleport term
    z, ah = _lin1_relu(x_p, w1_p, b1_p, alpha=alpha, tile=tile)

    # APPNP layers: K power-iteration steps each; A streamed per step.
    for layer in range(num_layers):
        if layer > 0:
            ah = alpha * z        # negligible (N, 128) rescale, once per layer
        for _ in range(K):
            z = _propagate_step(a_p, z, ah, tile=tile)

    # global_mean_pool -> (dropout: identity in eval) -> lin2 -> log_softmax
    return _epilogue(pool_p, z, w2_p, b2)


# TODO(synk): block-sparse adjacency via PrefetchScalarGridSpec (skipping
# all-zero A blocks) not implemented; dense bf16 A is streamed instead.


# ---------------------------------------------------------------------------
# Plain-JAX glue: dense GCN-normalized adjacency, mean-pool matrix, init.
# ---------------------------------------------------------------------------
def build_gcn_adjacency(edge_index, num_nodes, edge_weight=None):
    """Dense D^{-1/2} (A + I) D^{-1/2}; A_hat[dst, src] so that A_hat @ x
    aggregates messages at the destination node (PyG convention)."""
    src = edge_index[0]
    dst = edge_index[1]
    if edge_weight is None:
        edge_weight = jnp.ones(src.shape[0], dtype=jnp.float32)
    loop = jnp.arange(num_nodes, dtype=src.dtype)
    src = jnp.concatenate([src, loop])
    dst = jnp.concatenate([dst, loop])
    w = jnp.concatenate([edge_weight,
                         jnp.ones(num_nodes, dtype=jnp.float32)])
    deg = jnp.zeros((num_nodes,), jnp.float32).at[dst].add(w)
    dinv = jnp.where(deg > 0, lax.rsqrt(deg), 0.0)
    norm = dinv[dst] * w * dinv[src]
    a_hat = jnp.zeros((num_nodes, num_nodes), jnp.float32).at[dst, src].add(norm)
    return a_hat


def build_mean_pool(batch, num_graphs):
    onehot = (batch[None, :] == jnp.arange(num_graphs)[:, None]).astype(jnp.float32)
    counts = jnp.maximum(onehot.sum(axis=1, keepdims=True), 1.0)
    return onehot / counts


def linear_init(key, fan_in, fan_out):
    """Deterministic init matching torch Linear's U(-1/sqrt(fan_in), +...)."""
    kw, kb = jax.random.split(key)
    bound = 1.0 / jnp.sqrt(fan_in)
    w = jax.random.uniform(kw, (fan_in, fan_out), jnp.float32, -bound, bound)
    b = jax.random.uniform(kb, (1, fan_out), jnp.float32, -bound, bound)
    return w, b


def _reference_forward(x, a_hat, pool, w1, b1, w2, b2, *, alpha, K, num_layers):
    h = jax.nn.relu(x @ w1 + b1)
    z = h
    for _ in range(num_layers):
        hl = z
        for _ in range(K):
            z = (1.0 - alpha) * (a_hat @ z) + alpha * hl
    pooled = pool @ z
    logits = pooled @ w2 + b2
    return jax.nn.log_softmax(logits, axis=1)


if __name__ == "__main__":
    # Small synthetic graph batch: 2 graphs of 8 nodes each (bidirectional rings).
    num_features, num_hidden, num_classes = 16, 32, 4
    alpha, K, num_layers = 0.2, 5, 1
    nodes_per_graph, num_graphs = 8, 2
    N = nodes_per_graph * num_graphs

    src_list, dst_list = [], []
    for g in range(num_graphs):
        off = g * nodes_per_graph
        for i in range(nodes_per_graph):
            j = (i + 1) % nodes_per_graph
            src_list += [off + i, off + j]
            dst_list += [off + j, off + i]
    edge_index = jnp.array([src_list, dst_list], dtype=jnp.int32)
    batch = jnp.repeat(jnp.arange(num_graphs, dtype=jnp.int32), nodes_per_graph)

    key = jax.random.PRNGKey(0)
    kx, k1, k2 = jax.random.split(key, 3)
    x = jax.random.normal(kx, (N, num_features), jnp.float32)
    w1, b1 = linear_init(k1, num_features, num_hidden)
    w2, b2 = linear_init(k2, num_hidden, num_classes)

    a_hat = build_gcn_adjacency(edge_index, N)          # (N, N)
    pool = build_mean_pool(batch, num_graphs)           # (G, N)

    out = appnp_net_forward(x, a_hat, pool, w1, b1, w2, b2,
                            alpha=alpha, K=K, num_layers=num_layers)
    out = jax.block_until_ready(out)

    ref = _reference_forward(x, a_hat, pool, w1, b1, w2, b2,
                             alpha=alpha, K=K, num_layers=num_layers)

    assert out.shape == (num_graphs, num_classes)
    assert bool(jnp.all(jnp.isfinite(out)))
    # bf16 adjacency + default MXU precision -> small drift vs f32 reference.
    max_err = float(jnp.max(jnp.abs(out - ref)))
    assert max_err < 0.1, f"max abs error vs reference: {max_err}"
    print("KERNEL_OK")
</pallas_src>

<mosaic_0001>
module attributes {stable_mosaic.version = 11 : i64} {
  func.func @_propagate_kernel(%arg0: i32, %arg1: i32, %arg2: memref<128x128xbf16, #tpu.memory_space<vmem>>, %arg3: memref<128x128xf32, #tpu.memory_space<vmem>>, %arg4: memref<128x128xf32, #tpu.memory_space<vmem>>, %arg5: memref<128x128xf32, #tpu.memory_space<vmem>>, %arg6: memref<128x128xf32, #tpu.memory_space<vmem>>) attributes {dimension_semantics = [#tpu.dimension_semantics<parallel>, #tpu.dimension_semantics<arbitrary>], iteration_bounds = array<i64: 1, 1>, scalar_prefetch = 0 : i64, scratch_operands = 1 : i64, tpu.core_type = #tpu.core_type<tc>, window_params = [{transform_indices = @transform_0, window_bounds = array<i64: 128, 128>}, {transform_indices = @transform_1, window_bounds = array<i64: 128, 128>}, {transform_indices = @transform_2, window_bounds = array<i64: 128, 128>}, {transform_indices = @transform_3, window_bounds = array<i64: 128, 128>}]} {
    %c0_i32 = arith.constant 0 : i32
    %0 = arith.cmpi eq, %arg1, %c0_i32 : i32
    %1 = arith.extui %0 : i1 to i32
    %c0_i32_0 = arith.constant 0 : i32
    %2 = arith.cmpi ne, %1, %c0_i32_0 : i32
    scf.if %2 {
      %c0_10 = arith.constant 0 : index
      %c0_11 = arith.constant 0 : index
      %13 = vector.load %arg4[%c0_10, %c0_11] : memref<128x128xf32, #tpu.memory_space<vmem>>, vector<128x128xf32>
      %c0_12 = arith.constant 0 : index
      %c0_13 = arith.constant 0 : index
      %14 = vector.load %arg6[%c0_12, %c0_13] : memref<128x128xf32, #tpu.memory_space<vmem>>, vector<128x128xf32>
      tpu.vector_store %arg6[%c0_12, %c0_13], %13 {strides = array<i32>} : memref<128x128xf32, #tpu.memory_space<vmem>>, vector<128x128xf32>,
    } else {
    }
    %c0 = arith.constant 0 : index
    %c0_1 = arith.constant 0 : index
    %3 = vector.load %arg6[%c0, %c0_1] : memref<128x128xf32, #tpu.memory_space<vmem>>, vector<128x128xf32>
    %c0_2 = arith.constant 0 : index
    %c0_3 = arith.constant 0 : index
    %4 = vector.load %arg2[%c0_2, %c0_3] : memref<128x128xbf16, #tpu.memory_space<vmem>>, vector<128x128xbf16>
    %c0_4 = arith.constant 0 : index
    %c0_5 = arith.constant 0 : index
    %5 = vector.load %arg3[%c0_4, %c0_5] : memref<128x128xf32, #tpu.memory_space<vmem>>, vector<128x128xf32>
    %6 = arith.truncf %5 : vector<128x128xf32> to vector<128x128xbf16>
    %cst = arith.constant dense<0.000000e+00> : vector<128x128xf32>
    %7 = tpu.matmul %4, %6, %cst {dimension_numbers = #tpu.dot_dimension_numbers<[1], [0], [0], [1], [0, 0, 1, 1], [], []>} : vector<128x128xbf16>, vector<128x128xbf16>, vector<128x128xf32> -> vector<128x128xf32>
    %8 = arith.addf %3, %7 : vector<128x128xf32>
    %c0_6 = arith.constant 0 : index
    %c0_7 = arith.constant 0 : index
    %9 = vector.load %arg6[%c0_6, %c0_7] : memref<128x128xf32, #tpu.memory_space<vmem>>, vector<128x128xf32>
    tpu.vector_store %arg6[%c0_6, %c0_7], %8 {strides = array<i32>} : memref<128x128xf32, #tpu.memory_space<vmem>>, vector<128x128xf32>,
    %c0_i32_8 = arith.constant 0 : i32
    %10 = arith.cmpi eq, %arg1, %c0_i32_8 : i32
    %11 = arith.extui %10 : i1 to i32
    %c0_i32_9 = arith.constant 0 : i32
    %12 = arith.cmpi ne, %11, %c0_i32_9 : i32
    scf.if %12 {
      %c0_10 = arith.constant 0 : index
      %c0_11 = arith.constant 0 : index
      %13 = vector.load %arg6[%c0_10, %c0_11] : memref<128x128xf32, #tpu.memory_space<vmem>>, vector<128x128xf32>
      %c0_12 = arith.constant 0 : index
      %c0_13 = arith.constant 0 : index
      %14 = vector.load %arg5[%c0_12, %c0_13] : memref<128x128xf32, #tpu.memory_space<vmem>>, vector<128x128xf32>
      tpu.vector_store %arg5[%c0_12, %c0_13], %13 {strides = array<i32>} : memref<128x128xf32, #tpu.memory_space<vmem>>, vector<128x128xf32>,
    } else {
    }
    return
  }
  func.func @transform_0(%arg0: i32, %arg1: i32) -> (i32, i32) {
    %c0_i32 = arith.constant 0 : i32
    return %arg0, %arg1 : i32, i32
  }
  func.func @transform_1(%arg0: i32, %arg1: i32) -> (i32, i32) {
    %c0_i32 = arith.constant 0 : i32
    %c0_i32_0 = arith.constant 0 : i32
    return %arg1, %c0_i32 : i32, i32
  }
  func.func @transform_2(%arg0: i32, %arg1: i32) -> (i32, i32) {
    %c0_i32 = arith.constant 0 : i32
    %c0_i32_0 = arith.constant 0 : i32
    return %arg0, %c0_i32 : i32, i32
  }
  func.func @transform_3(%arg0: i32, %arg1: i32) -> (i32, i32) {
    %c0_i32 = arith.constant 0 : i32
    %c0_i32_0 = arith.constant 0 : i32
    return %arg0, %c0_i32 : i32, i32
  }
}

module attributes {stable_mosaic.version = 11 : i64} {
  func.func @_lin1_relu_kernel(%arg0: i32, %arg1: memref<128x16xf32, #tpu.memory_space<vmem>>, %arg2: memref<16x128xf32, #tpu.memory_space<vmem>>, %arg3: memref<1x128xf32, #tpu.memory_space<vmem>>, %arg4: memref<128x128xf32, #tpu.memory_space<vmem>>, %arg5: memref<128x128xf32, #tpu.memory_space<vmem>>) attributes {dimension_semantics = [#tpu.dimension_semantics<parallel>], iteration_bounds = array<i64: 1>, scalar_prefetch = 0 : i64, scratch_operands = 0 : i64, tpu.core_type = #tpu.core_type<tc>, window_params = [{transform_indices = @transform_0, window_bounds = array<i64: 128, 16>}, {pipeline_mode = #tpu.pipeline_mode<synchronous>, transform_indices = @transform_1, window_bounds = array<i64: 16, 128>}, {pipeline_mode = #tpu.pipeline_mode<synchronous>, transform_indices = @transform_2, window_bounds = array<i64: 1, 128>}, {transform_indices = @transform_3, window_bounds = array<i64: 128, 128>}, {transform_indices = @transform_4, window_bounds = array<i64: 128, 128>}]} {
    %c0 = arith.constant 0 : index
    %c0_0 = arith.constant 0 : index
    %0 = vector.load %arg1[%c0, %c0_0] : memref<128x16xf32, #tpu.memory_space<vmem>>, vector<128x16xf32>
    %c0_1 = arith.constant 0 : index
    %c0_2 = arith.constant 0 : index
    %1 = vector.load %arg2[%c0_1, %c0_2] : memref<16x128xf32, #tpu.memory_space<vmem>>, vector<16x128xf32>
    %cst = arith.constant dense<0.000000e+00> : vector<128x128xf32>
    %2 = tpu.matmul %0, %1, %cst {dimension_numbers = #tpu.dot_dimension_numbers<[1], [0], [0], [1], [0, 0, 1, 1], [], []>} : vector<128x16xf32>, vector<16x128xf32>, vector<128x128xf32> -> vector<128x128xf32>
    %c0_3 = arith.constant 0 : index
    %c0_4 = arith.constant 0 : index
    %3 = vector.load %arg3[%c0_3, %c0_4] : memref<1x128xf32, #tpu.memory_space<vmem>>, vector<1x128xf32>
    %4 = vector.broadcast %3 : vector<1x128xf32> to vector<128x128xf32>
    %5 = arith.addf %2, %4 : vector<128x128xf32>
    %cst_5 = arith.constant 0.000000e+00 : f32
    %6 = vector.broadcast %cst_5 : f32 to vector<128x128xf32>
    %7 = arith.maximumf %5, %6 : vector<128x128xf32>
    %c0_6 = arith.constant 0 : index
    %c0_7 = arith.constant 0 : index
    %8 = vector.load %arg4[%c0_6, %c0_7] : memref<128x128xf32, #tpu.memory_space<vmem>>, vector<128x128xf32>
    tpu.vector_store %arg4[%c0_6, %c0_7], %7 {strides = array<i32>} : memref<128x128xf32, #tpu.memory_space<vmem>>, vector<128x128xf32>,
    %cst_8 = arith.constant 2.000000e-01 : f32
    %9 = vector.broadcast %cst_8 : f32 to vector<128x128xf32>
    %10 = arith.mulf %9, %7 : vector<128x128xf32>
    %c0_9 = arith.constant 0 : index
    %c0_10 = arith.constant 0 : index
    %11 = vector.load %arg5[%c0_9, %c0_10] : memref<128x128xf32, #tpu.memory_space<vmem>>, vector<128x128xf32>
    tpu.vector_store %arg5[%c0_9, %c0_10], %10 {strides = array<i32>} : memref<128x128xf32, #tpu.memory_space<vmem>>, vector<128x128xf32>,
    return
  }
  func.func @transform_0(%arg0: i32) -> (i32, i32) {
    %c0_i32 = arith.constant 0 : i32
    %c0_i32_0 = arith.constant 0 : i32
    return %arg0, %c0_i32 : i32, i32
  }
  func.func @transform_1(%arg0: i32) -> (i32, i32) {
    %c0_i32 = arith.constant 0 : i32
    %c0_i32_0 = arith.constant 0 : i32
    %c0_i32_1 = arith.constant 0 : i32
    return %c0_i32, %c0_i32_0 : i32, i32
  }
  func.func @transform_2(%arg0: i32) -> (i32, i32) {
    %c0_i32 = arith.constant 0 : i32
    %c0_i32_0 = arith.constant 0 : i32
    %c0_i32_1 = arith.constant 0 : i32
    return %c0_i32, %c0_i32_0 : i32, i32
  }
  func.func @transform_3(%arg0: i32) -> (i32, i32) {
    %c0_i32 = arith.constant 0 : i32
    %c0_i32_0 = arith.constant 0 : i32
    return %arg0, %c0_i32 : i32, i32
  }
  func.func @transform_4(%arg0: i32) -> (i32, i32) {
    %c0_i32 = arith.constant 0 : i32
    %c0_i32_0 = arith.constant 0 : i32
    return %arg0, %c0_i32 : i32, i32
  }
}

module attributes {stable_mosaic.version = 11 : i64} {
  func.func @_epilogue_kernel(%arg0: memref<2x128xf32, #tpu.memory_space<vmem>>, %arg1: memref<128x128xf32, #tpu.memory_space<vmem>>, %arg2: memref<128x4xf32, #tpu.memory_space<vmem>>, %arg3: memref<1x4xf32, #tpu.memory_space<vmem>>, %arg4: memref<2x4xf32, #tpu.memory_space<vmem>>) attributes {dimension_semantics = [], scalar_prefetch = 0 : i64, scratch_operands = 0 : i64, tpu.core_type = #tpu.core_type<tc>} {
    %c0 = arith.constant 0 : index
    %c0_0 = arith.constant 0 : index
    %0 = vector.load %arg0[%c0, %c0_0] : memref<2x128xf32, #tpu.memory_space<vmem>>, vector<2x128xf32>
    %c0_1 = arith.constant 0 : index
    %c0_2 = arith.constant 0 : index
    %1 = vector.load %arg1[%c0_1, %c0_2] : memref<128x128xf32, #tpu.memory_space<vmem>>, vector<128x128xf32>
    %cst = arith.constant dense<0.000000e+00> : vector<2x128xf32>
    %2 = tpu.matmul %0, %1, %cst {dimension_numbers = #tpu.dot_dimension_numbers<[1], [0], [0], [1], [0, 0, 1, 1], [], []>} : vector<2x128xf32>, vector<128x128xf32>, vector<2x128xf32> -> vector<2x128xf32>
    %c0_3 = arith.constant 0 : index
    %c0_4 = arith.constant 0 : index
    %3 = vector.load %arg2[%c0_3, %c0_4] : memref<128x4xf32, #tpu.memory_space<vmem>>, vector<128x4xf32>
    %cst_5 = arith.constant dense<0.000000e+00> : vector<2x4xf32>
    %4 = tpu.matmul %2, %3, %cst_5 {dimension_numbers = #tpu.dot_dimension_numbers<[1], [0], [0], [1], [0, 0, 1, 1], [], []>} : vector<2x128xf32>, vector<128x4xf32>, vector<2x4xf32> -> vector<2x4xf32>
    %c0_6 = arith.constant 0 : index
    %c0_7 = arith.constant 0 : index
    %5 = vector.load %arg3[%c0_6, %c0_7] : memref<1x4xf32, #tpu.memory_space<vmem>>, vector<1x4xf32>
    %6 = vector.broadcast %5 : vector<1x4xf32> to vector<2x4xf32>
    %7 = arith.addf %4, %6 : vector<2x4xf32>
    %cst_8 = arith.constant dense<0xFF800000> : vector<2xf32>
    %8 = vector.multi_reduction <maximumf>, %7, %cst_8 [1] : vector<2x4xf32> to vector<2xf32>
    %9 = vector.shape_cast %8 : vector<2xf32> to vector<2x1xf32>
    %10 = vector.broadcast %9 : vector<2x1xf32> to vector<2x4xf32>
    %11 = arith.subf %7, %10 : vector<2x4xf32>
    %12 = math.exp %11 : vector<2x4xf32>
    %cst_9 = arith.constant dense<0.000000e+00> : vector<2xf32>
    %13 = vector.multi_reduction <add>, %12, %cst_9 [1] : vector<2x4xf32> to vector<2xf32>
    %14 = vector.shape_cast %13 : vector<2xf32> to vector<2x1xf32>
    %15 = math.log %14 : vector<2x1xf32>
    %16 = vector.broadcast %15 : vector<2x1xf32> to vector<2x4xf32>
    %17 = arith.subf %11, %16 : vector<2x4xf32>
    %c0_10 = arith.constant 0 : index
    %c0_11 = arith.constant 0 : index
    %18 = vector.load %arg4[%c0_10, %c0_11] : memref<2x4xf32, #tpu.memory_space<vmem>>, vector<2x4xf32>
    tpu.vector_store %arg4[%c0_10, %c0_11], %17 {strides = array<i32>} : memref<2x4xf32, #tpu.memory_space<vmem>>, vector<2x4xf32>,
    return
  }
}

</mosaic_0001>

<llo_original>
// kernel: appnp_net_forward.8
$region0: #{appnp_net_forward.8}
  #allocation0 [shape = 'u32[]', space=smem, size = 0x4, offset = 0x4, fixed_abs, tag = 'smem constant byte address 0x4 - core index']
  #allocation1 [shape = 'u32[144,128]{1,0:T(1,128)}', space=vmem, size = 0x12000, scoped, tag = 'internal scratch']
  #allocation2 [shape = 'f32[128,128]{1,0:T(8,128)}', space=vmem, size = 0x10000, scoped, tag = 'scratch operand']
  %s0 = inlined_call_operand.vmem [shape: bf16[128,128], index: 0, kind: input, shape index: {}]
  %s1 = inlined_call_operand.vmem [shape: f32[128,128], index: 1, kind: input, shape index: {}]
  %s2 = inlined_call_operand.vmem [shape: f32[128,128], index: 2, kind: input, shape index: {}]
  %s3 = inlined_call_operand.vmem [shape: f32[128,128], index: 3, kind: output, shape index: {}]
  %s4 = sld [smem:[#allocation0]]
  $region30: #{appnp_net_forward.8} parent=0
    _
  %s6 = ssub.s32 1, %s4
  %s7 = scalar_select 0, %s6, %s4
  // Predicated region
  $region2: #{appnp_net_forward.8} parent=0 // pred_check
    _
  $region3: #{appnp_net_forward.8} parent=0 // pred_check_branch
    %9 = sbr.rel (0) target = $region5
  $region4: #{appnp_net_forward.8} parent=0 // pred_region
    _
  $region5: #{appnp_net_forward.8} parent=0 // pred_fallthru
    _
  // Predicated region
  $region6: #{appnp_net_forward.8} parent=0 // pred_check
    _
  $region7: #{appnp_net_forward.8} parent=0 // pred_check_branch
    %11 = sbr.rel (0) target = $region9
  $region8: #{appnp_net_forward.8} parent=0 // pred_region
    _
  $region9: #{appnp_net_forward.8} parent=0 // pred_fallthru
    _
  // Predicated region
  $region10: #{appnp_net_forward.8} parent=0 // pred_check
    _
  $region11: #{appnp_net_forward.8} parent=0 // pred_check_branch
    %13 = sbr.rel (0) target = $region13
  $region12: #{appnp_net_forward.8} parent=0 // pred_region
    _
  $region13: #{appnp_net_forward.8} parent=0 // pred_fallthru
    _
  %p15 = scmp.eq.s32.totalorder 0, 0
  // Predicated region
  $region14: #{appnp_net_forward.8} parent=0 // pred_check
    %p16 = pneg %p15
  $region15: #{appnp_net_forward.8} parent=0 // pred_check_branch
    %18 = sbr.rel (%p16) target = $region17
  $region16: #{appnp_net_forward.8} parent=0 // pred_region
    %v19 = vld [vmem:[%s2] sm:$0xff]
    %v20 = vld [vmem:[%s2 + $0x8] sm:$0xff]
    %v21 = vld [vmem:[%s2 + $0x10] sm:$0xff]
    %v22 = vld [vmem:[%s2 + $0x18] sm:$0xff]
    %v23 = vld [vmem:[%s2 + $0x20] sm:$0xff]
    %v24 = vld [vmem:[%s2 + $0x28] sm:$0xff]
    %v25 = vld [vmem:[%s2 + $0x30] sm:$0xff]
    %v26 = vld [vmem:[%s2 + $0x38] sm:$0xff]
    %v27 = vld [vmem:[%s2 + $0x40] sm:$0xff]
    %v28 = vld [vmem:[%s2 + $0x48] sm:$0xff]
    %v29 = vld [vmem:[%s2 + $0x50] sm:$0xff]
    %v30 = vld [vmem:[%s2 + $0x58] sm:$0xff]
    %v31 = vld [vmem:[%s2 + $0x60] sm:$0xff]
    %v32 = vld [vmem:[%s2 + $0x68] sm:$0xff]
    %v33 = vld [vmem:[%s2 + $0x70] sm:$0xff]
    %v34 = vld [vmem:[%s2 + $0x78] sm:$0xff]
    %35 = vst [vmem:[#allocation2] sm:$0xff] %v19
    %36 = vst [vmem:[#allocation2 + $0x8] sm:$0xff] %v20
    %37 = vst [vmem:[#allocation2 + $0x10] sm:$0xff] %v21
    %38 = vst [vmem:[#allocation2 + $0x18] sm:$0xff] %v22
    %39 = vst [vmem:[#allocation2 + $0x20] sm:$0xff] %v23
    %40 = vst [vmem:[#allocation2 + $0x28] sm:$0xff] %v24
    %41 = vst [vmem:[#allocation2 + $0x30] sm:$0xff] %v25
    %42 = vst [vmem:[#allocation2 + $0x38] sm:$0xff] %v26
    %43 = vst [vmem:[#allocation2 + $0x40] sm:$0xff] %v27
    %44 = vst [vmem:[#allocation2 + $0x48] sm:$0xff] %v28
    %45 = vst [vmem:[#allocation2 + $0x50] sm:$0xff] %v29
    %46 = vst [vmem:[#allocation2 + $0x58] sm:$0xff] %v30
    %47 = vst [vmem:[#allocation2 + $0x60] sm:$0xff] %v31
    %48 = vst [vmem:[#allocation2 + $0x68] sm:$0xff] %v32
    %49 = vst [vmem:[#allocation2 + $0x70] sm:$0xff] %v33
    %50 = vst [vmem:[#allocation2 + $0x78] sm:$0xff] %v34
  $region17: #{appnp_net_forward.8} parent=0 // pred_fallthru
    _
  %v51 = vld [vmem:[#allocation2] sm:$0xff]
  %v52 = vld [vmem:[#allocation2 + $0x8] sm:$0xff]
  %v53 = vld [vmem:[#allocation2 + $0x10] sm:$0xff]
  %v54 = vld [vmem:[#allocation2 + $0x18] sm:$0xff]
  %v55 = vld [vmem:[#allocation2 + $0x20] sm:$0xff]
  %v56 = vld [vmem:[#allocation2 + $0x28] sm:$0xff]
  %v57 = vld [vmem:[#allocation2 + $0x30] sm:$0xff]
  %v58 = vld [vmem:[#allocation2 + $0x38] sm:$0xff]
  %v59 = vld [vmem:[#allocation2 + $0x40] sm:$0xff]
  %v60 = vld [vmem:[#allocation2 + $0x48] sm:$0xff]
  %v61 = vld [vmem:[#allocation2 + $0x50] sm:$0xff]
  %v62 = vld [vmem:[#allocation2 + $0x58] sm:$0xff]
  %v63 = vld [vmem:[#allocation2 + $0x60] sm:$0xff]
  %v64 = vld [vmem:[#allocation2 + $0x68] sm:$0xff]
  %v65 = vld [vmem:[#allocation2 + $0x70] sm:$0xff]
  %v66 = vld [vmem:[#allocation2 + $0x78] sm:$0xff]
  %v67 = vld [vmem:[%s0] sm:$0xf]
  %v68 = vld [vmem:[%s0 + $0x4] sm:$0xf]
  %v69 = vld [vmem:[%s0 + $0x8] sm:$0xf]
  %v70 = vld [vmem:[%s0 + $0xc] sm:$0xf]
  %v71 = vld [vmem:[%s0 + $0x10] sm:$0xf]
  %v72 = vld [vmem:[%s0 + $0x14] sm:$0xf]
  %v73 = vld [vmem:[%s0 + $0x18] sm:$0xf]
  %v74 = vld [vmem:[%s0 + $0x1c] sm:$0xf]
  %v75 = vld [vmem:[%s0 + $0x20] sm:$0xf]
  %v76 = vld [vmem:[%s0 + $0x24] sm:$0xf]
  %v77 = vld [vmem:[%s0 + $0x28] sm:$0xf]
  %v78 = vld [vmem:[%s0 + $0x2c] sm:$0xf]
  %v79 = vld [vmem:[%s0 + $0x30] sm:$0xf]
  %v80 = vld [vmem:[%s0 + $0x34] sm:$0xf]
  %v81 = vld [vmem:[%s0 + $0x38] sm:$0xf]
  %v82 = vld [vmem:[%s0 + $0x3c] sm:$0xf]
  %v83 = vld [vmem:[%s1] sm:$0xff]
  %v84 = vld [vmem:[%s1 + $0x8] sm:$0xff]
  %v85 = vld [vmem:[%s1 + $0x10] sm:$0xff]
  %v86 = vld [vmem:[%s1 + $0x18] sm:$0xff]
  %v87 = vld [vmem:[%s1 + $0x20] sm:$0xff]
  %v88 = vld [vmem:[%s1 + $0x28] sm:$0xff]
  %v89 = vld [vmem:[%s1 + $0x30] sm:$0xff]
  %v90 = vld [vmem:[%s1 + $0x38] sm:$0xff]
  %v91 = vld [vmem:[%s1 + $0x40] sm:$0xff]
  %v92 = vld [vmem:[%s1 + $0x48] sm:$0xff]
  %v93 = vld [vmem:[%s1 + $0x50] sm:$0xff]
  %v94 = vld [vmem:[%s1 + $0x58] sm:$0xff]
  %v95 = vld [vmem:[%s1 + $0x60] sm:$0xff]
  %v96 = vld [vmem:[%s1 + $0x68] sm:$0xff]
  %v97 = vld [vmem:[%s1 + $0x70] sm:$0xff]
  %v98 = vld [vmem:[%s1 + $0x78] sm:$0xff]
  %v99 = vpack.c.bf16 %v84, %v83
  %v100 = vpack.c.bf16 %v86, %v85
  %v101 = vpack.c.bf16 %v88, %v87
  %v102 = vpack.c.bf16 %v90, %v89
  %v103 = vpack.c.bf16 %v92, %v91
  %v104 = vpack.c.bf16 %v94, %v93
  %v105 = vpack.c.bf16 %v96, %v95
  %v106 = vpack.c.bf16 %v98, %v97
  %v123 = vunpack.c.l.b16 %v67
  %v124 = vunpack.c.l.b16 %v68
  %v125 = vunpack.c.l.b16 %v69
  %v126 = vunpack.c.l.b16 %v70
  %v127 = vunpack.c.l.b16 %v71
  %v128 = vunpack.c.l.b16 %v72
  %v129 = vunpack.c.l.b16 %v73
  %v130 = vunpack.c.l.b16 %v74
  %v131 = vunpack.c.l.b16 %v75
  %v132 = vunpack.c.l.b16 %v76
  %v133 = vunpack.c.l.b16 %v77
  %v134 = vunpack.c.l.b16 %v78
  %v135 = vunpack.c.l.b16 %v79
  %v136 = vunpack.c.l.b16 %v80
  %v137 = vunpack.c.l.b16 %v81
  %v138 = vunpack.c.l.b16 %v82
  %v139 = vpack.c.b16 %v124, %v123
  %v140 = vpack.c.b16 %v126, %v125
  %v141 = vpack.c.b16 %v128, %v127
  %v142 = vpack.c.b16 %v130, %v129
  %v143 = vpack.c.b16 %v132, %v131
  %v144 = vpack.c.b16 %v134, %v133
  %v145 = vpack.c.b16 %v136, %v135
  %v146 = vpack.c.b16 %v138, %v137
  %155 = vmatprep.subr.bf16.mxu0 0
  %156 = vmatpush1.bf16.msra.mxu0 %v99
  %157 = vmatprep.subr.bf16.mxu0 0
  %158 = vmatpush1.bf16.msra.mxu0 %v100
  %159 = vmatprep.subr.bf16.mxu0 0
  %160 = vmatpush1.bf16.msra.mxu0 %v101
  %161 = vmatprep.subr.bf16.mxu0 0
  %162 = vmatpush1.bf16.msra.mxu0 %v102
  %163 = vmatprep.subr.bf16.mxu0 0
  %164 = vmatpush1.bf16.msra.mxu0 %v103
  %165 = vmatprep.subr.bf16.mxu0 0
  %166 = vmatpush1.bf16.msra.mxu0 %v104
  %167 = vmatprep.subr.bf16.mxu0 0
  %168 = vmatpush1.bf16.msra.mxu0 %v105
  %169 = vmatprep.subr.bf16.mxu0 0
  %170 = vmatpush1.bf16.msra.mxu0 %v106
  %171 = vmatprep.subr.bf16.mxu0 0
  %172 = vmatpush1.bf16.msra.mxu0 0
  %173 = vmatprep.subr.bf16.mxu0 0
  %174 = vmatpush1.bf16.msra.mxu0 0
  %175 = vmatprep.subr.bf16.mxu0 0
  %176 = vmatpush1.bf16.msra.mxu0 0
  %177 = vmatprep.subr.bf16.mxu0 0
  %178 = vmatpush1.bf16.msra.mxu0 0
  %179 = vmatprep.subr.bf16.mxu0 0
  %180 = vmatpush1.bf16.msra.mxu0 0
  %181 = vmatprep.subr.bf16.mxu0 0
  %182 = vmatpush1.bf16.msra.mxu0 0
  %183 = vmatprep.subr.bf16.mxu0 0
  %184 = vmatpush1.bf16.msra.mxu0 0
  %185 = vmatprep.subr.bf16.mxu0 0
  %186 = vmatpush1.bf16.msra.mxu0 0
  %187 = vmatprep.mubr.bf16.mxu0 0
  %188 = vmatmul.mubr.bf16.gmra.mrb[0].mxu0 %v139
  %v189 = vpop.f32.mrb[0].mxu0
  %v190 = vadd.f32 0.0, %v189
  %v191 = vpop.f32.mrb[0].mxu0
  %v192 = vpop.f32.mrb[0].mxu0
  %v193 = vadd.f32 0.0, %v192
  %v194 = vpop.f32.mrb[0].mxu0
  %195 = vmatprep.mubr.bf16.mxu0 0
  %196 = vmatmul.mubr.bf16.gmra.mrb[0].mxu0 %v140
  %v197 = vpop.f32.mrb[0].mxu0
  %v198 = vadd.f32 0.0, %v197
  %v199 = vpop.f32.mrb[0].mxu0
  %v200 = vpop.f32.mrb[0].mxu0
  %v201 = vadd.f32 0.0, %v200
  %v202 = vpop.f32.mrb[0].mxu0
  %203 = vmatprep.mubr.bf16.mxu0 0
  %204 = vmatmul.mubr.bf16.gmra.mrb[0].mxu0 %v141
  %v205 = vpop.f32.mrb[0].mxu0
  %v206 = vadd.f32 0.0, %v205
  %v207 = vpop.f32.mrb[0].mxu0
  %v208 = vpop.f32.mrb[0].mxu0
  %v209 = vadd.f32 0.0, %v208
  %v210 = vpop.f32.mrb[0].mxu0
  %211 = vmatprep.mubr.bf16.mxu0 0
  %212 = vmatmul.mubr.bf16.gmra.mrb[0].mxu0 %v142
  %v213 = vpop.f32.mrb[0].mxu0
  %v214 = vadd.f32 0.0, %v213
  %v215 = vpop.f32.mrb[0].mxu0
  %v216 = vpop.f32.mrb[0].mxu0
  %v217 = vadd.f32 0.0, %v216
  %v218 = vpop.f32.mrb[0].mxu0
  %219 = vmatprep.mubr.bf16.mxu0 0
  %220 = vmatmul.mubr.bf16.gmra.mrb[0].mxu0 %v143
  %v221 = vpop.f32.mrb[0].mxu0
  %v222 = vadd.f32 0.0, %v221
  %v223 = vpop.f32.mrb[0].mxu0
  %v224 = vpop.f32.mrb[0].mxu0
  %v225 = vadd.f32 0.0, %v224
  %v226 = vpop.f32.mrb[0].mxu0
  %227 = vmatprep.mubr.bf16.mxu0 0
  %228 = vmatmul.mubr.bf16.gmra.mrb[0].mxu0 %v144
  %v229 = vpop.f32.mrb[0].mxu0
  %v230 = vadd.f32 0.0, %v229
  %v231 = vpop.f32.mrb[0].mxu0
  %v232 = vpop.f32.mrb[0].mxu0
  %v233 = vadd.f32 0.0, %v232
  %v234 = vpop.f32.mrb[0].mxu0
  %235 = vmatprep.mubr.bf16.mxu0 0
  %236 = vmatmul.mubr.bf16.gmra.mrb[0].mxu0 %v145
  %v237 = vpop.f32.mrb[0].mxu0
  %v238 = vadd.f32 0.0, %v237
  %v239 = vpop.f32.mrb[0].mxu0
  %v240 = vpop.f32.mrb[0].mxu0
  %v241 = vadd.f32 0.0, %v240
  %v242 = vpop.f32.mrb[0].mxu0
  %243 = vmatprep.mubr.bf16.mxu0 0
  %244 = vmatmul.mubr.bf16.gmra.mrb[0].mxu0 %v146
  %v245 = vpop.f32.mrb[0].mxu0
  %v246 = vadd.f32 0.0, %v245
  %v247 = vpop.f32.mrb[0].mxu0
  %v248 = vpop.f32.mrb[0].mxu0
  %v249 = vadd.f32 0.0, %v248
  %v250 = vpop.f32.mrb[0].mxu0
  %251 = vdwg.mxu0
  %v252 = vadd.f32 %v51, %v190
  %v253 = vadd.f32 %v52, %v193
  %v254 = vadd.f32 %v53, %v198
  %v255 = vadd.f32 %v54, %v201
  %v256 = vadd.f32 %v55, %v206
  %v257 = vadd.f32 %v56, %v209
  %v258 = vadd.f32 %v57, %v214
  %v259 = vadd.f32 %v58, %v217
  %v260 = vadd.f32 %v59, %v222
  %v261 = vadd.f32 %v60, %v225
  %v262 = vadd.f32 %v61, %v230
  %v263 = vadd.f32 %v62, %v233
  %v264 = vadd.f32 %v63, %v238
  %v265 = vadd.f32 %v64, %v241
  %v266 = vadd.f32 %v65, %v246
  %v267 = vadd.f32 %v66, %v249
  %268 = vst [vmem:[#allocation2] sm:$0xff] %v252
  %269 = vst [vmem:[#allocation2 + $0x8] sm:$0xff] %v253
  %270 = vst [vmem:[#allocation2 + $0x10] sm:$0xff] %v254
  %271 = vst [vmem:[#allocation2 + $0x18] sm:$0xff] %v255
  %272 = vst [vmem:[#allocation2 + $0x20] sm:$0xff] %v256
  %273 = vst [vmem:[#allocation2 + $0x28] sm:$0xff] %v257
  %274 = vst [vmem:[#allocation2 + $0x30] sm:$0xff] %v258
  %275 = vst [vmem:[#allocation2 + $0x38] sm:$0xff] %v259
  %276 = vst [vmem:[#allocation2 + $0x40] sm:$0xff] %v260
  %277 = vst [vmem:[#allocation2 + $0x48] sm:$0xff] %v261
  %278 = vst [vmem:[#allocation2 + $0x50] sm:$0xff] %v262
  %279 = vst [vmem:[#allocation2 + $0x58] sm:$0xff] %v263
  %280 = vst [vmem:[#allocation2 + $0x60] sm:$0xff] %v264
  %281 = vst [vmem:[#allocation2 + $0x68] sm:$0xff] %v265
  %282 = vst [vmem:[#allocation2 + $0x70] sm:$0xff] %v266
  %283 = vst [vmem:[#allocation2 + $0x78] sm:$0xff] %v267
  // Predicated region
  $region18: #{appnp_net_forward.8} parent=0 // pred_check
    %p284 = pneg %p15
  $region19: #{appnp_net_forward.8} parent=0 // pred_check_branch
    %286 = sbr.rel (%p284) target = $region21
  $region20: #{appnp_net_forward.8} parent=0 // pred_region
    %v287 = vld [vmem:[#allocation2] sm:$0xff]
    %v288 = vld [vmem:[#allocation2 + $0x8] sm:$0xff]
    %v289 = vld [vmem:[#allocation2 + $0x10] sm:$0xff]
    %v290 = vld [vmem:[#allocation2 + $0x18] sm:$0xff]
    %v291 = vld [vmem:[#allocation2 + $0x20] sm:$0xff]
    %v292 = vld [vmem:[#allocation2 + $0x28] sm:$0xff]
    %v293 = vld [vmem:[#allocation2 + $0x30] sm:$0xff]
    %v294 = vld [vmem:[#allocation2 + $0x38] sm:$0xff]
    %v295 = vld [vmem:[#allocation2 + $0x40] sm:$0xff]
    %v296 = vld [vmem:[#allocation2 + $0x48] sm:$0xff]
    %v297 = vld [vmem:[#allocation2 + $0x50] sm:$0xff]
    %v298 = vld [vmem:[#allocation2 + $0x58] sm:$0xff]
    %v299 = vld [vmem:[#allocation2 + $0x60] sm:$0xff]
    %v300 = vld [vmem:[#allocation2 + $0x68] sm:$0xff]
    %v301 = vld [vmem:[#allocation2 + $0x70] sm:$0xff]
    %v302 = vld [vmem:[#allocation2 + $0x78] sm:$0xff]
    %303 = vst [vmem:[%s3] sm:$0xff] %v287
    %304 = vst [vmem:[%s3 + $0x8] sm:$0xff] %v288
    %305 = vst [vmem:[%s3 + $0x10] sm:$0xff] %v289
    %306 = vst [vmem:[%s3 + $0x18] sm:$0xff] %v290
    %307 = vst [vmem:[%s3 + $0x20] sm:$0xff] %v291
    %308 = vst [vmem:[%s3 + $0x28] sm:$0xff] %v292
    %309 = vst [vmem:[%s3 + $0x30] sm:$0xff] %v293
    %310 = vst [vmem:[%s3 + $0x38] sm:$0xff] %v294
    %311 = vst [vmem:[%s3 + $0x40] sm:$0xff] %v295
    %312 = vst [vmem:[%s3 + $0x48] sm:$0xff] %v296
    %313 = vst [vmem:[%s3 + $0x50] sm:$0xff] %v297
    %314 = vst [vmem:[%s3 + $0x58] sm:$0xff] %v298
    %315 = vst [vmem:[%s3 + $0x60] sm:$0xff] %v299
    %316 = vst [vmem:[%s3 + $0x68] sm:$0xff] %v300
    %317 = vst [vmem:[%s3 + $0x70] sm:$0xff] %v301
    %318 = vst [vmem:[%s3 + $0x78] sm:$0xff] %v302
  $region21: #{appnp_net_forward.8} parent=0 // pred_fallthru
    _
  // Predicated region
  $region22: #{appnp_net_forward.8} parent=0 // pred_check
    _
  $region23: #{appnp_net_forward.8} parent=0 // pred_check_branch
    %320 = sbr.rel (0) target = $region25
  $region24: #{appnp_net_forward.8} parent=0 // pred_region
    _
  $region25: #{appnp_net_forward.8} parent=0 // pred_fallthru
    _
  // Predicated region
  $region26: #{appnp_net_forward.8} parent=0 // pred_check
    _
  $region27: #{appnp_net_forward.8} parent=0 // pred_check_branch
    %322 = sbr.rel (0) target = $region29
  $region28: #{appnp_net_forward.8} parent=0 // pred_region
    _
  $region29: #{appnp_net_forward.8} parent=0 // pred_fallthru
    _

// kernel: appnp_net_forward.7
$region0: #{appnp_net_forward.7}
  #allocation0 [shape = 'u32[]', space=smem, size = 0x4, offset = 0x4, fixed_abs, tag = 'smem constant byte address 0x4 - core index']
  #allocation1 [shape = 'u32[144,128]{1,0:T(1,128)}', space=vmem, size = 0x12000, scoped, tag = 'internal scratch']
  %s0 = inlined_call_operand.vmem [shape: f32[128,16], index: 0, kind: input, shape index: {}]
  %s1 = inlined_call_operand.vmem [shape: f32[16,128], index: 1, kind: input, shape index: {}]
  %s2 = inlined_call_operand.vmem [shape: f32[1,128], index: 2, kind: input, shape index: {}]
  %s3 = inlined_call_operand.vmem [shape: f32[128,128], index: 3, kind: output, shape index: {0}]
  %s4 = inlined_call_operand.vmem [shape: f32[128,128], index: 4, kind: output, shape index: {1}]
  %5 = xla_tuple %s3, %s4
  %s6 = sld [smem:[#allocation0]]
  $region30: #{appnp_net_forward.7} parent=0
    _
  %s8 = ssub.s32 1, %s6
  %s9 = scalar_select 0, %s8, %s6
  // Predicated region
  $region2: #{appnp_net_forward.7} parent=0 // pred_check
    _
  $region3: #{appnp_net_forward.7} parent=0 // pred_check_branch
    %11 = sbr.rel (0) target = $region5
  $region4: #{appnp_net_forward.7} parent=0 // pred_region
    _
  $region5: #{appnp_net_forward.7} parent=0 // pred_fallthru
    _
  // Predicated region
  $region6: #{appnp_net_forward.7} parent=0 // pred_check
    _
  $region7: #{appnp_net_forward.7} parent=0 // pred_check_branch
    %13 = sbr.rel (0) target = $region9
  $region8: #{appnp_net_forward.7} parent=0 // pred_region
    _
  $region9: #{appnp_net_forward.7} parent=0 // pred_fallthru
    _
  // Predicated region
  $region10: #{appnp_net_forward.7} parent=0 // pred_check
    _
  $region11: #{appnp_net_forward.7} parent=0 // pred_check_branch
    %15 = sbr.rel (0) target = $region13
  $region12: #{appnp_net_forward.7} parent=0 // pred_region
    _
  $region13: #{appnp_net_forward.7} parent=0 // pred_fallthru
    _
  %v16 = vld [vmem:[%s0] sm:$0xff]
  %v17 = vld [vmem:[%s0 + $0x8] sm:$0xff]
  %v18 = vld [vmem:[%s0 + $0x10] sm:$0xff]
  %v19 = vld [vmem:[%s0 + $0x18] sm:$0xff]
  %v20 = vld [vmem:[%s0 + $0x20] sm:$0xff]
  %v21 = vld [vmem:[%s0 + $0x28] sm:$0xff]
  %v22 = vld [vmem:[%s0 + $0x30] sm:$0xff]
  %v23 = vld [vmem:[%s0 + $0x38] sm:$0xff]
  %v24 = vld [vmem:[%s0 + $0x40] sm:$0xff]
  %v25 = vld [vmem:[%s0 + $0x48] sm:$0xff]
  %v26 = vld [vmem:[%s0 + $0x50] sm:$0xff]
  %v27 = vld [vmem:[%s0 + $0x58] sm:$0xff]
  %v28 = vld [vmem:[%s0 + $0x60] sm:$0xff]
  %v29 = vld [vmem:[%s0 + $0x68] sm:$0xff]
  %v30 = vld [vmem:[%s0 + $0x70] sm:$0xff]
  %v31 = vld [vmem:[%s0 + $0x78] sm:$0xff]
  %v32 = vld [vmem:[%s1] sm:$0xff]
  %v33 = vld [vmem:[%s1 + $0x8] sm:$0xff]
  %v34 = vld [vmem:[%s2] sm:$0x1]
  %v36 = vlaneseq
  %v37 = vshrl.u32 %v36, 7
  %v38 = vsub.s32 0, %v37
  %v39 = vrot.slane %v34, %v38
  %vm41 = vcmask 130048
  %v43 = vsel %vm41, %v16, 0
  %v46 = vsel %vm41, %v17, 0
  %v49 = vsel %vm41, %v18, 0
  %v52 = vsel %vm41, %v19, 0
  %v55 = vsel %vm41, %v20, 0
  %v58 = vsel %vm41, %v21, 0
  %v61 = vsel %vm41, %v22, 0
  %v64 = vsel %vm41, %v23, 0
  %v67 = vsel %vm41, %v24, 0
  %v70 = vsel %vm41, %v25, 0
  %v73 = vsel %vm41, %v26, 0
  %v76 = vsel %vm41, %v27, 0
  %v79 = vsel %vm41, %v28, 0
  %v82 = vsel %vm41, %v29, 0
  %v85 = vsel %vm41, %v30, 0
  %v88 = vsel %vm41, %v31, 0
  %90 = vmatprep.subr.mxu0 0.0
  %91 = vmatpush1.msra.mxu0 %v32
  %92 = vmatprep.subr.mxu0 0.0
  %93 = vmatpush1.msra.mxu0 %v33
  %94 = vmatprep.subr.mxu0 0.0
  %95 = vmatpush1.msra.mxu0 0.0
  %96 = vmatprep.subr.mxu0 0.0
  %97 = vmatpush1.msra.mxu0 0.0
  %98 = vmatprep.subr.mxu0 0.0
  %99 = vmatpush1.msra.mxu0 0.0
  %100 = vmatprep.subr.mxu0 0.0
  %101 = vmatpush1.msra.mxu0 0.0
  %102 = vmatprep.subr.mxu0 0.0
  %103 = vmatpush1.msra.mxu0 0.0
  %104 = vmatprep.subr.mxu0 0.0
  %105 = vmatpush1.msra.mxu0 0.0
  %106 = vmatprep.subr.mxu0 0.0
  %107 = vmatpush1.msra.mxu0 0.0
  %108 = vmatprep.subr.mxu0 0.0
  %109 = vmatpush1.msra.mxu0 0.0
  %110 = vmatprep.subr.mxu0 0.0
  %111 = vmatpush1.msra.mxu0 0.0
  %112 = vmatprep.subr.mxu0 0.0
  %113 = vmatpush1.msra.mxu0 0.0
  %114 = vmatprep.subr.mxu0 0.0
  %115 = vmatpush1.msra.mxu0 0.0
  %116 = vmatprep.subr.mxu0 0.0
  %117 = vmatpush1.msra.mxu0 0.0
  %118 = vmatprep.subr.mxu0 0.0
  %119 = vmatpush1.msra.mxu0 0.0
  %120 = vmatprep.subr.mxu0 0.0
  %121 = vmatpush1.msra.mxu0 0.0
  %122 = vmatprep.subr.mxu0 0.0
  %123 = vmatpush1.msra.mxu0 0.0
  %124 = vmatprep.subr.mxu0 0.0
  %125 = vmatpush1.msra.mxu0 0.0
  %126 = vmatprep.subr.mxu0 0.0
  %127 = vmatpush1.msra.mxu0 0.0
  %128 = vmatprep.subr.mxu0 0.0
  %129 = vmatpush1.msra.mxu0 0.0
  %130 = vmatprep.subr.mxu0 0.0
  %131 = vmatpush1.msra.mxu0 0.0
  %132 = vmatprep.subr.mxu0 0.0
  %133 = vmatpush1.msra.mxu0 0.0
  %134 = vmatprep.subr.mxu0 0.0
  %135 = vmatpush1.msra.mxu0 0.0
  %136 = vmatprep.subr.mxu0 0.0
  %137 = vmatpush1.msra.mxu0 0.0
  %138 = vmatprep.subr.mxu0 0.0
  %139 = vmatpush1.msra.mxu0 0.0
  %140 = vmatprep.subr.mxu0 0.0
  %141 = vmatpush1.msra.mxu0 0.0
  %142 = vmatprep.subr.mxu0 0.0
  %143 = vmatpush1.msra.mxu0 0.0
  %144 = vmatprep.subr.mxu0 0.0
  %145 = vmatpush1.msra.mxu0 0.0
  %146 = vmatprep.subr.mxu0 0.0
  %147 = vmatpush1.msra.mxu0 0.0
  %148 = vmatprep.subr.mxu0 0.0
  %149 = vmatpush1.msra.mxu0 0.0
  %150 = vmatprep.subr.mxu0 0.0
  %151 = vmatpush1.msra.mxu0 0.0
  %152 = vmatprep.subr.mxu0 0.0
  %153 = vmatpush1.msra.mxu0 0.0
  %154 = vmatprep.mubr.f32.mxu0 0.0
  %155 = vmatmul.mubr.f32.gmra.mrb[0].mxu0 %v43
  %v156 = vpop.f32.mrb[0].mxu0
  %v157 = vadd.f32 %v39, %v156
  %v158 = vpop.f32.mrb[0].mxu0
  %159 = vmatprep.mubr.f32.mxu0 0.0
  %160 = vmatmul.mubr.f32.gmra.mrb[0].mxu0 %v46
  %v161 = vpop.f32.mrb[0].mxu0
  %v162 = vadd.f32 %v39, %v161
  %v163 = vpop.f32.mrb[0].mxu0
  %164 = vmatprep.mubr.f32.mxu0 0.0
  %165 = vmatmul.mubr.f32.gmra.mrb[0].mxu0 %v49
  %v166 = vpop.f32.mrb[0].mxu0
  %v167 = vadd.f32 %v39, %v166
  %v168 = vpop.f32.mrb[0].mxu0
  %169 = vmatprep.mubr.f32.mxu0 0.0
  %170 = vmatmul.mubr.f32.gmra.mrb[0].mxu0 %v52
  %v171 = vpop.f32.mrb[0].mxu0
  %v172 = vadd.f32 %v39, %v171
  %v173 = vpop.f32.mrb[0].mxu0
  %174 = vmatprep.mubr.f32.mxu0 0.0
  %175 = vmatmul.mubr.f32.gmra.mrb[0].mxu0 %v55
  %v176 = vpop.f32.mrb[0].mxu0
  %v177 = vadd.f32 %v39, %v176
  %v178 = vpop.f32.mrb[0].mxu0
  %179 = vmatprep.mubr.f32.mxu0 0.0
  %180 = vmatmul.mubr.f32.gmra.mrb[0].mxu0 %v58
  %v181 = vpop.f32.mrb[0].mxu0
  %v182 = vadd.f32 %v39, %v181
  %v183 = vpop.f32.mrb[0].mxu0
  %184 = vmatprep.mubr.f32.mxu0 0.0
  %185 = vmatmul.mubr.f32.gmra.mrb[0].mxu0 %v61
  %v186 = vpop.f32.mrb[0].mxu0
  %v187 = vadd.f32 %v39, %v186
  %v188 = vpop.f32.mrb[0].mxu0
  %189 = vmatprep.mubr.f32.mxu0 0.0
  %190 = vmatmul.mubr.f32.gmra.mrb[0].mxu0 %v64
  %v191 = vpop.f32.mrb[0].mxu0
  %v192 = vadd.f32 %v39, %v191
  %v193 = vpop.f32.mrb[0].mxu0
  %194 = vmatprep.mubr.f32.mxu0 0.0
  %195 = vmatmul.mubr.f32.gmra.mrb[0].mxu0 %v67
  %v196 = vpop.f32.mrb[0].mxu0
  %v197 = vadd.f32 %v39, %v196
  %v198 = vpop.f32.mrb[0].mxu0
  %199 = vmatprep.mubr.f32.mxu0 0.0
  %200 = vmatmul.mubr.f32.gmra.mrb[0].mxu0 %v70
  %v201 = vpop.f32.mrb[0].mxu0
  %v202 = vadd.f32 %v39, %v201
  %v203 = vpop.f32.mrb[0].mxu0
  %204 = vmatprep.mubr.f32.mxu0 0.0
  %205 = vmatmul.mubr.f32.gmra.mrb[0].mxu0 %v73
  %v206 = vpop.f32.mrb[0].mxu0
  %v207 = vadd.f32 %v39, %v206
  %v208 = vpop.f32.mrb[0].mxu0
  %209 = vmatprep.mubr.f32.mxu0 0.0
  %210 = vmatmul.mubr.f32.gmra.mrb[0].mxu0 %v76
  %v211 = vpop.f32.mrb[0].mxu0
  %v212 = vadd.f32 %v39, %v211
  %v213 = vpop.f32.mrb[0].mxu0
  %214 = vmatprep.mubr.f32.mxu0 0.0
  %215 = vmatmul.mubr.f32.gmra.mrb[0].mxu0 %v79
  %v216 = vpop.f32.mrb[0].mxu0
  %v217 = vadd.f32 %v39, %v216
  %v218 = vpop.f32.mrb[0].mxu0
  %219 = vmatprep.mubr.f32.mxu0 0.0
  %220 = vmatmul.mubr.f32.gmra.mrb[0].mxu0 %v82
  %v221 = vpop.f32.mrb[0].mxu0
  %v222 = vadd.f32 %v39, %v221
  %v223 = vpop.f32.mrb[0].mxu0
  %224 = vmatprep.mubr.f32.mxu0 0.0
  %225 = vmatmul.mubr.f32.gmra.mrb[0].mxu0 %v85
  %v226 = vpop.f32.mrb[0].mxu0
  %v227 = vadd.f32 %v39, %v226
  %v228 = vpop.f32.mrb[0].mxu0
  %229 = vmatprep.mubr.f32.mxu0 0.0
  %230 = vmatmul.mubr.f32.gmra.mrb[0].mxu0 %v88
  %v231 = vpop.f32.mrb[0].mxu0
  %v232 = vadd.f32 %v39, %v231
  %v233 = vpop.f32.mrb[0].mxu0
  %234 = vdwg.mxu0
  %v235 = vmax.f32 %v157, 0.0
  %v236 = vmax.f32 %v162, 0.0
  %v237 = vmax.f32 %v167, 0.0
  %v238 = vmax.f32 %v172, 0.0
  %v239 = vmax.f32 %v177, 0.0
  %v240 = vmax.f32 %v182, 0.0
  %v241 = vmax.f32 %v187, 0.0
  %v242 = vmax.f32 %v192, 0.0
  %v243 = vmax.f32 %v197, 0.0
  %v244 = vmax.f32 %v202, 0.0
  %v245 = vmax.f32 %v207, 0.0
  %v246 = vmax.f32 %v212, 0.0
  %v247 = vmax.f32 %v217, 0.0
  %v248 = vmax.f32 %v222, 0.0
  %v249 = vmax.f32 %v227, 0.0
  %v250 = vmax.f32 %v232, 0.0
  %251 = vst [vmem:[%s3] sm:$0xff] %v235
  %252 = vst [vmem:[%s3 + $0x8] sm:$0xff] %v236
  %253 = vst [vmem:[%s3 + $0x10] sm:$0xff] %v237
  %254 = vst [vmem:[%s3 + $0x18] sm:$0xff] %v238
  %255 = vst [vmem:[%s3 + $0x20] sm:$0xff] %v239
  %256 = vst [vmem:[%s3 + $0x28] sm:$0xff] %v240
  %257 = vst [vmem:[%s3 + $0x30] sm:$0xff] %v241
  %258 = vst [vmem:[%s3 + $0x38] sm:$0xff] %v242
  %259 = vst [vmem:[%s3 + $0x40] sm:$0xff] %v243
  %260 = vst [vmem:[%s3 + $0x48] sm:$0xff] %v244
  %261 = vst [vmem:[%s3 + $0x50] sm:$0xff] %v245
  %262 = vst [vmem:[%s3 + $0x58] sm:$0xff] %v246
  %263 = vst [vmem:[%s3 + $0x60] sm:$0xff] %v247
  %264 = vst [vmem:[%s3 + $0x68] sm:$0xff] %v248
  %265 = vst [vmem:[%s3 + $0x70] sm:$0xff] %v249
  %266 = vst [vmem:[%s3 + $0x78] sm:$0xff] %v250
  %v267 = vmul.f32 %v235, 0.2
  %v268 = vmul.f32 %v236, 0.2
  %v269 = vmul.f32 %v237, 0.2
  %v270 = vmul.f32 %v238, 0.2
  %v271 = vmul.f32 %v239, 0.2
  %v272 = vmul.f32 %v240, 0.2
  %v273 = vmul.f32 %v241, 0.2
  %v274 = vmul.f32 %v242, 0.2
  %v275 = vmul.f32 %v243, 0.2
  %v276 = vmul.f32 %v244, 0.2
  %v277 = vmul.f32 %v245, 0.2
  %v278 = vmul.f32 %v246, 0.2
  %v279 = vmul.f32 %v247, 0.2
  %v280 = vmul.f32 %v248, 0.2
  %v281 = vmul.f32 %v249, 0.2
  %v282 = vmul.f32 %v250, 0.2
  %283 = vst [vmem:[%s4] sm:$0xff] %v267
  %284 = vst [vmem:[%s4 + $0x8] sm:$0xff] %v268
  %285 = vst [vmem:[%s4 + $0x10] sm:$0xff] %v269
  %286 = vst [vmem:[%s4 + $0x18] sm:$0xff] %v270
  %287 = vst [vmem:[%s4 + $0x20] sm:$0xff] %v271
  %288 = vst [vmem:[%s4 + $0x28] sm:$0xff] %v272
  %289 = vst [vmem:[%s4 + $0x30] sm:$0xff] %v273
  %290 = vst [vmem:[%s4 + $0x38] sm:$0xff] %v274
  %291 = vst [vmem:[%s4 + $0x40] sm:$0xff] %v275
  %292 = vst [vmem:[%s4 + $0x48] sm:$0xff] %v276
  %293 = vst [vmem:[%s4 + $0x50] sm:$0xff] %v277
  %294 = vst [vmem:[%s4 + $0x58] sm:$0xff] %v278
  %295 = vst [vmem:[%s4 + $0x60] sm:$0xff] %v279
  %296 = vst [vmem:[%s4 + $0x68] sm:$0xff] %v280
  %297 = vst [vmem:[%s4 + $0x70] sm:$0xff] %v281
  %298 = vst [vmem:[%s4 + $0x78] sm:$0xff] %v282
  // Predicated region
  $region14: #{appnp_net_forward.7} parent=0 // pred_check
    _
  $region15: #{appnp_net_forward.7} parent=0 // pred_check_branch
    %300 = sbr.rel (0) target = $region17
  $region16: #{appnp_net_forward.7} parent=0 // pred_region
    _
  $region17: #{appnp_net_forward.7} parent=0 // pred_fallthru
    _
  // Predicated region
  $region18: #{appnp_net_forward.7} parent=0 // pred_check
    _
  $region19: #{appnp_net_forward.7} parent=0 // pred_check_branch
    %302 = sbr.rel (0) target = $region21
  $region20: #{appnp_net_forward.7} parent=0 // pred_region
    _
  $region21: #{appnp_net_forward.7} parent=0 // pred_fallthru
    _
  // Predicated region
  $region22: #{appnp_net_forward.7} parent=0 // pred_check
    _
  $region23: #{appnp_net_forward.7} parent=0 // pred_check_branch
    %304 = sbr.rel (0) target = $region25
  $region24: #{appnp_net_forward.7} parent=0 // pred_region
    _
  $region25: #{appnp_net_forward.7} parent=0 // pred_fallthru
    _
  // Predicated region
  $region26: #{appnp_net_forward.7} parent=0 // pred_check
    _
  $region27: #{appnp_net_forward.7} parent=0 // pred_check_branch
    %306 = sbr.rel (0) target = $region29
  $region28: #{appnp_net_forward.7} parent=0 // pred_region
    _
  $region29: #{appnp_net_forward.7} parent=0 // pred_fallthru
    _

// kernel: appnp_net_forward.13
$region0: #{appnp_net_forward.13}
  #allocation0 [shape = 'u32[]', space=smem, size = 0x4, offset = 0x4, fixed_abs, tag = 'smem constant byte address 0x4 - core index']
  #allocation1 [shape = 'u32[144,128]{1,0:T(1,128)}', space=vmem, size = 0x12000, scoped, tag = 'internal scratch']
  %s0 = inlined_call_operand.vmem [shape: f32[2,128], index: 0, kind: input, shape index: {}]
  %s1 = inlined_call_operand.vmem [shape: f32[128,128], index: 1, kind: input, shape index: {}]
  %s2 = inlined_call_operand.vmem [shape: f32[128,4], index: 2, kind: input, shape index: {}]
  %s3 = inlined_call_operand.vmem [shape: f32[1,4], index: 3, kind: input, shape index: {}]
  %s4 = inlined_call_operand.hbm [shape: f32[2,4], index: 4, kind: output, shape index: {}]
  %s5 = sld [smem:[#allocation0]]
  $region26: #{appnp_net_forward.13} parent=0
    _
  %s7 = ssub.s32 1, %s5
  %s8 = scalar_select 0, %s7, %s5
  $region1: #{appnp_net_forward.13} parent=0
    #allocation2 [shape = 'u8[1024]{0}', space=vmem, size = 0x400, scoped, tag = 'output window, operand 0, single buffered']
    #allocation3 [shape = 's32[1]{0}', space=sflag, size = 0x4, scoped, tag = 'scoped memory for appnp_net_forward.13']
    %9 = vsyncpa [#allocation3], 0
    // Predicated region
    $region2: #{appnp_net_forward.13} parent=1 // pred_check
      _
    $region3: #{appnp_net_forward.13} parent=1 // pred_check_branch
      %11 = sbr.rel (0) target = $region5
    $region4: #{appnp_net_forward.13} parent=1 // pred_region
      _
    $region5: #{appnp_net_forward.13} parent=1 // pred_fallthru
      _
    // Predicated region
    $region6: #{appnp_net_forward.13} parent=1 // pred_check
      _
    $region7: #{appnp_net_forward.13} parent=1 // pred_check_branch
      %13 = sbr.rel (0) target = $region9
    $region8: #{appnp_net_forward.13} parent=1 // pred_region
      _
    $region9: #{appnp_net_forward.13} parent=1 // pred_fallthru
      _
    // Predicated region
    $region10: #{appnp_net_forward.13} parent=1 // pred_check
      _
    $region11: #{appnp_net_forward.13} parent=1 // pred_check_branch
      %15 = sbr.rel (0) target = $region13
    $region12: #{appnp_net_forward.13} parent=1 // pred_region
      _
    $region13: #{appnp_net_forward.13} parent=1 // pred_fallthru
      _
    // Predicated region
    $region14: #{appnp_net_forward.13} parent=1 // pred_check
      _
    $region15: #{appnp_net_forward.13} parent=1 // pred_check_branch
      %17 = sbr.rel (0) target = $region17
    $region16: #{appnp_net_forward.13} parent=1 // pred_region
      _
    $region17: #{appnp_net_forward.13} parent=1 // pred_fallthru
      _
    %v18 = vld [vmem:[%s0] sm:$0x3]
    %v19 = vld [vmem:[%s1] sm:$0xff]
    %v20 = vld [vmem:[%s1 + $0x8] sm:$0xff]
    %v21 = vld [vmem:[%s1 + $0x10] sm:$0xff]
    %v22 = vld [vmem:[%s1 + $0x18] sm:$0xff]
    %v23 = vld [vmem:[%s1 + $0x20] sm:$0xff]
    %v24 = vld [vmem:[%s1 + $0x28] sm:$0xff]
    %v25 = vld [vmem:[%s1 + $0x30] sm:$0xff]
    %v26 = vld [vmem:[%s1 + $0x38] sm:$0xff]
    %v27 = vld [vmem:[%s1 + $0x40] sm:$0xff]
    %v28 = vld [vmem:[%s1 + $0x48] sm:$0xff]
    %v29 = vld [vmem:[%s1 + $0x50] sm:$0xff]
    %v30 = vld [vmem:[%s1 + $0x58] sm:$0xff]
    %v31 = vld [vmem:[%s1 + $0x60] sm:$0xff]
    %v32 = vld [vmem:[%s1 + $0x68] sm:$0xff]
    %v33 = vld [vmem:[%s1 + $0x70] sm:$0xff]
    %v34 = vld [vmem:[%s1 + $0x78] sm:$0xff]
    %35 = vmatprep.subr.mxu0 0.0
    %36 = vmatpush1.msra.mxu0 %v19
    %37 = vmatprep.subr.mxu0 0.0
    %38 = vmatpush1.msra.mxu0 %v20
    %39 = vmatprep.subr.mxu0 0.0
    %40 = vmatpush1.msra.mxu0 %v21
    %41 = vmatprep.subr.mxu0 0.0
    %42 = vmatpush1.msra.mxu0 %v22
    %43 = vmatprep.subr.mxu0 0.0
    %44 = vmatpush1.msra.mxu0 %v23
    %45 = vmatprep.subr.mxu0 0.0
    %46 = vmatpush1.msra.mxu0 %v24
    %47 = vmatprep.subr.mxu0 0.0
    %48 = vmatpush1.msra.mxu0 %v25
    %49 = vmatprep.subr.mxu0 0.0
    %50 = vmatpush1.msra.mxu0 %v26
    %51 = vmatprep.subr.mxu0 0.0
    %52 = vmatpush1.msra.mxu0 %v27
    %53 = vmatprep.subr.mxu0 0.0
    %54 = vmatpush1.msra.mxu0 %v28
    %55 = vmatprep.subr.mxu0 0.0
    %56 = vmatpush1.msra.mxu0 %v29
    %57 = vmatprep.subr.mxu0 0.0
    %58 = vmatpush1.msra.mxu0 %v30
    %59 = vmatprep.subr.mxu0 0.0
    %60 = vmatpush1.msra.mxu0 %v31
    %61 = vmatprep.subr.mxu0 0.0
    %62 = vmatpush1.msra.mxu0 %v32
    %63 = vmatprep.subr.mxu0 0.0
    %64 = vmatpush1.msra.mxu0 %v33
    %65 = vmatprep.subr.mxu0 0.0
    %66 = vmatpush1.msra.mxu0 %v34
    %67 = vmatprep.subr.mxu0 0.0
    %68 = vmatpush1.msra.mxu0 0.0
    %69 = vmatprep.subr.mxu0 0.0
    %70 = vmatpush1.msra.mxu0 0.0
    %71 = vmatprep.subr.mxu0 0.0
    %72 = vmatpush1.msra.mxu0 0.0
    %73 = vmatprep.subr.mxu0 0.0
    %74 = vmatpush1.msra.mxu0 0.0
    %75 = vmatprep.subr.mxu0 0.0
    %76 = vmatpush1.msra.mxu0 0.0
    %77 = vmatprep.subr.mxu0 0.0
    %78 = vmatpush1.msra.mxu0 0.0
    %79 = vmatprep.subr.mxu0 0.0
    %80 = vmatpush1.msra.mxu0 0.0
    %81 = vmatprep.subr.mxu0 0.0
    %82 = vmatpush1.msra.mxu0 0.0
    %83 = vmatprep.subr.mxu0 0.0
    %84 = vmatpush1.msra.mxu0 0.0
    %85 = vmatprep.subr.mxu0 0.0
    %86 = vmatpush1.msra.mxu0 0.0
    %87 = vmatprep.subr.mxu0 0.0
    %88 = vmatpush1.msra.mxu0 0.0
    %89 = vmatprep.subr.mxu0 0.0
    %90 = vmatpush1.msra.mxu0 0.0
    %91 = vmatprep.subr.mxu0 0.0
    %92 = vmatpush1.msra.mxu0 0.0
    %93 = vmatprep.subr.mxu0 0.0
    %94 = vmatpush1.msra.mxu0 0.0
    %95 = vmatprep.subr.mxu0 0.0
    %96 = vmatpush1.msra.mxu0 0.0
    %97 = vmatprep.subr.mxu0 0.0
    %98 = vmatpush1.msra.mxu0 0.0
    %99 = vmatprep.mubr.f32.mxu0 0.0
    %100 = vmatmul.mubr.f32.gmra.mrb[0].mxu0 %v18
    %v101 = vpop.f32.mrb[0].mxu0
    %v102 = vadd.f32 0.0, %v101
    %v103 = vpop.f32.mrb[0].mxu0
    %104 = vdwg.mxu0
    %v105 = vld [vmem:[%s2] sm:$0xff]
    %v106 = vld [vmem:[%s2 + $0x8] sm:$0xff]
    %v107 = vld [vmem:[%s2 + $0x10] sm:$0xff]
    %v108 = vld [vmem:[%s2 + $0x18] sm:$0xff]
    %v109 = vld [vmem:[%s2 + $0x20] sm:$0xff]
    %v110 = vld [vmem:[%s2 + $0x28] sm:$0xff]
    %v111 = vld [vmem:[%s2 + $0x30] sm:$0xff]
    %v112 = vld [vmem:[%s2 + $0x38] sm:$0xff]
    %v113 = vld [vmem:[%s2 + $0x40] sm:$0xff]
    %v114 = vld [vmem:[%s2 + $0x48] sm:$0xff]
    %v115 = vld [vmem:[%s2 + $0x50] sm:$0xff]
    %v116 = vld [vmem:[%s2 + $0x58] sm:$0xff]
    %v117 = vld [vmem:[%s2 + $0x60] sm:$0xff]
    %v118 = vld [vmem:[%s2 + $0x68] sm:$0xff]
    %v119 = vld [vmem:[%s2 + $0x70] sm:$0xff]
    %v120 = vld [vmem:[%s2 + $0x78] sm:$0xff]
    %v121 = vld [vmem:[%s3] sm:$0x1]
    %v123 = vlaneseq
    %v124 = vshrl.u32 %v123, 7
    %v125 = vsub.s32 0, %v124
    %v126 = vrot.slane %v121, %v125
    %128 = vmatprep.subr.mxu0 0.0
    %129 = vmatpush1.msra.mxu0 %v105
    %130 = vmatprep.subr.mxu0 0.0
    %131 = vmatpush1.msra.mxu0 %v106
    %132 = vmatprep.subr.mxu0 0.0
    %133 = vmatpush1.msra.mxu0 %v107
    %134 = vmatprep.subr.mxu0 0.0
    %135 = vmatpush1.msra.mxu0 %v108
    %136 = vmatprep.subr.mxu0 0.0
    %137 = vmatpush1.msra.mxu0 %v109
    %138 = vmatprep.subr.mxu0 0.0
    %139 = vmatpush1.msra.mxu0 %v110
    %140 = vmatprep.subr.mxu0 0.0
    %141 = vmatpush1.msra.mxu0 %v111
    %142 = vmatprep.subr.mxu0 0.0
    %143 = vmatpush1.msra.mxu0 %v112
    %144 = vmatprep.subr.mxu0 0.0
    %145 = vmatpush1.msra.mxu0 %v113
    %146 = vmatprep.subr.mxu0 0.0
    %147 = vmatpush1.msra.mxu0 %v114
    %148 = vmatprep.subr.mxu0 0.0
    %149 = vmatpush1.msra.mxu0 %v115
    %150 = vmatprep.subr.mxu0 0.0
    %151 = vmatpush1.msra.mxu0 %v116
    %152 = vmatprep.subr.mxu0 0.0
    %153 = vmatpush1.msra.mxu0 %v117
    %154 = vmatprep.subr.mxu0 0.0
    %155 = vmatpush1.msra.mxu0 %v118
    %156 = vmatprep.subr.mxu0 0.0
    %157 = vmatpush1.msra.mxu0 %v119
    %158 = vmatprep.subr.mxu0 0.0
    %159 = vmatpush1.msra.mxu0 %v120
    %160 = vmatprep.subr.mxu0 0.0
    %161 = vmatpush1.msra.mxu0 0.0
    %162 = vmatprep.subr.mxu0 0.0
    %163 = vmatpush1.msra.mxu0 0.0
    %164 = vmatprep.subr.mxu0 0.0
    %165 = vmatpush1.msra.mxu0 0.0
    %166 = vmatprep.subr.mxu0 0.0
    %167 = vmatpush1.msra.mxu0 0.0
    %168 = vmatprep.subr.mxu0 0.0
    %169 = vmatpush1.msra.mxu0 0.0
    %170 = vmatprep.subr.mxu0 0.0
    %171 = vmatpush1.msra.mxu0 0.0
    %172 = vmatprep.subr.mxu0 0.0
    %173 = vmatpush1.msra.mxu0 0.0
    %174 = vmatprep.subr.mxu0 0.0
    %175 = vmatpush1.msra.mxu0 0.0
    %176 = vmatprep.subr.mxu0 0.0
    %177 = vmatpush1.msra.mxu0 0.0
    %178 = vmatprep.subr.mxu0 0.0
    %179 = vmatpush1.msra.mxu0 0.0
    %180 = vmatprep.subr.mxu0 0.0
    %181 = vmatpush1.msra.mxu0 0.0
    %182 = vmatprep.subr.mxu0 0.0
    %183 = vmatpush1.msra.mxu0 0.0
    %184 = vmatprep.subr.mxu0 0.0
    %185 = vmatpush1.msra.mxu0 0.0
    %186 = vmatprep.subr.mxu0 0.0
    %187 = vmatpush1.msra.mxu0 0.0
    %188 = vmatprep.subr.mxu0 0.0
    %189 = vmatpush1.msra.mxu0 0.0
    %190 = vmatprep.subr.mxu0 0.0
    %191 = vmatpush1.msra.mxu0 0.0
    %192 = vmatprep.mubr.f32.mxu0 0.0
    %193 = vmatmul.mubr.f32.gmra.mrb[0].mxu0 %v102
    %v194 = vpop.f32.mrb[0].mxu0
    %v195 = vadd.f32 %v126, %v194
    %v196 = vpop.f32.mrb[0].mxu0
    %197 = vdwg.mxu0
    %vm198 = vcmask 25600
    %v199 = vsel %vm198, %v195, -inf
    %200 = vmax.xlane.f32.xlu0 %v199
    %v201 = vpop.xlane.xlu0 %200
    %v202 = vsub.f32 %v195, %v201
    %v203 = vmul.f32 %v202, 1.442695
    %v204 = vpow.pop %v203
    %v205 = vsel %vm198, %v204, 0.0
    %206 = vadd.xlane.f32.xlu0 %v205
    %v207 = vpop.xlane.xlu0 %206
    %v208 = vlog2.pop %v207
    %v209 = vmul.f32 %v208, 0.6931472
    %v210 = vsub.f32 %v202, %v209
    %211 = vst.msk [vmem:[#allocation2] sm:$0x3] %vm198, %v210
    // Predicated region
    $region18: #{appnp_net_forward.13} parent=1 // pred_check
      _
    $region19: #{appnp_net_forward.13} parent=1 // pred_check_branch
      %213 = sbr.rel (0) target = $region21
    $region20: #{appnp_net_forward.13} parent=1 // pred_region
      %s215 = ssub.s32 32, 32
      %216 = vsyncadd [#allocation3], %s215
      %s218 = sshll.u32 [#allocation2], 4
      %s219 = int_to_ptr.vmem [resolvable:$true] %s218
      %221 = dma.vmem_to_hbm [thread:$0]  %s219, 32, %s4, [#allocation3]
    $region21: #{appnp_net_forward.13} parent=1 // pred_fallthru
      _
    // Predicated region
    $region22: #{appnp_net_forward.13} parent=1 // pred_check
      _
    $region23: #{appnp_net_forward.13} parent=1 // pred_check_branch
      %223 = sbr.rel (0) target = $region25
    $region24: #{appnp_net_forward.13} parent=1 // pred_region
      %224 = dma.done [#allocation3], 32
    $region25: #{appnp_net_forward.13} parent=1 // pred_fallthru
      _
    %225 = vsyncpa [#allocation3], 1

</llo_original>
